<compile_context>
chip_gen: v7x
topology: tpu7x:2x2x1
jax: 0.10.0
libtpu: 0.0.40
codegen_flags: <defaults>
</compile_context>

<pallas_src>
import jax
import jax.numpy as jnp
from jax.experimental import pallas as pl
from jax.experimental.pallas import tpu as pltpu


def _round_up(x, m):
    return ((x + m - 1) // m) * m


def ffn_kernel(x_ref, w1_ref, b1_ref, w2_ref, b2_ref, o_ref):
    # x_ref: (tm, H) in MXU operand dtype; w1_ref/w2_ref: (H, H) pre-transposed
    # so the kernel does a plain x @ W (== x @ W^T for PyTorch's [out, in]
    # layout).  b1_ref/b2_ref: (1, H) f32 so bias add + ReLU happen on the f32
    # MXU accumulator (no double rounding when operands are bf16).
    h = jnp.dot(x_ref[...], w1_ref[...], preferred_element_type=jnp.float32)
    h = jnp.maximum(h + b1_ref[...], 0.0)                 # bias + ReLU in f32
    h = h.astype(w2_ref.dtype)                            # MXU operand dtype
    o = jnp.dot(h, w2_ref[...], preferred_element_type=jnp.float32) + b2_ref[...]
    # Dropout(p=0.2) in eval mode is the identity.
    # TODO(synk): training-mode dropout (pltpu.prng_seed + stateful_bernoulli) not implemented.
    o_ref[...] = o.astype(o_ref.dtype)


def ffn_pallas(x, w1_t, b1_r, w2_t, b2_r, *, tm=1024, out_dtype=None):
    """relu(x @ w1_t + b1) @ w2_t + b2 (dropout-as-identity, eval semantics).

    x: [..., H]; w1_t, w2_t: [H, H] already transposed from PyTorch's
    [out, in] layout and cast to the MXU operand dtype (bf16 recommended on
    v5e/v6e/v7x); b1_r, b2_r: [1, H] float32.
    out_dtype: HBM writeback dtype (defaults to x.dtype).
    """
    orig_shape = x.shape
    H = orig_shape[-1]
    out_dt = jnp.dtype(out_dtype) if out_dtype is not None else jnp.dtype(x.dtype)
    cdt = jnp.dtype(w1_t.dtype)

    x2d = x.reshape(-1, H).astype(cdt)
    M = x2d.shape[0]

    # Row tile: as large as possible (amortizes ~0.35 us/step pipeline
    # overhead), multiple of 8 (sublanes), but capped so the grid has >= 2
    # steps when there is enough work (keeps both v7x TensorCores busy).
    tm_cap = max(8, _round_up(tm, 8))
    if M <= 16:
        tm_eff = max(8, _round_up(M, 8))
    else:
        n_steps = max(2, pl.cdiv(M, tm_cap))
        tm_eff = min(tm_cap, _round_up(pl.cdiv(M, n_steps), 8))
    grid = (pl.cdiv(M, tm_eff),)   # ragged last tile handled by boundary masking

    c_item = cdt.itemsize
    o_item = out_dt.itemsize

    # Two (M,H)x(H,H) matmuls -> 4*M*H^2 flops.
    cost = pl.CostEstimate(
        flops=4 * M * H * H,
        transcendentals=0,
        bytes_accessed=(M * H * c_item          # x stream
                        + M * H * o_item        # out stream
                        + 2 * H * H * c_item    # W1^T, W2^T
                        + 2 * H * 4),           # biases
    )

    # x/out tiles are double-buffered by the pipeline; weights/biases have a
    # constant index_map (grid-resident).  Leave 2x headroom for compiler
    # scratch; cap at v7x's 64 MiB physical VMEM.
    vmem_needed = (2 * tm_eff * H * c_item          # x tiles
                   + 2 * tm_eff * H * o_item        # out tiles
                   + tm_eff * H * 4                 # f32 intermediate
                   + 2 * 2 * H * H * c_item         # W1^T, W2^T buffers
                   + 2 * 2 * H * 4)                 # biases
    vmem_limit = int(min(max(2 * vmem_needed, 16 << 20), 64 << 20))
    # TODO(synk): for large H where 2*H*H no longer fits VMEM (v7x: 64 MiB
    # physical), add a grid axis over the hidden dim instead of keeping both
    # weights fully resident.

    out2d = pl.pallas_call(
        ffn_kernel,
        out_shape=jax.ShapeDtypeStruct((M, H), out_dt),
        grid_spec=pltpu.PrefetchScalarGridSpec(
            num_scalar_prefetch=0,
            grid=grid,
            in_specs=[
                pl.BlockSpec((tm_eff, H), lambda i: (i, 0)),   # x rows (streamed)
                pl.BlockSpec((H, H), lambda i: (0, 0)),        # W1^T (resident)
                pl.BlockSpec((1, H), lambda i: (0, 0)),        # b1
                pl.BlockSpec((H, H), lambda i: (0, 0)),        # W2^T (resident)
                pl.BlockSpec((1, H), lambda i: (0, 0)),        # b2
            ],
            out_specs=pl.BlockSpec((tm_eff, H), lambda i: (i, 0)),
        ),
        compiler_params=pltpu.CompilerParams(
            dimension_semantics=("parallel",),   # row tiles shard across TCs (v7x)
            vmem_limit_bytes=vmem_limit,
        ),
        cost_estimate=cost,
    )(x2d, w1_t, b1_r, w2_t, b2_r)

    return out2d.reshape(orig_shape)


def make_ffn(w1, b1, w2, b2, *, compute_dtype=None, out_dtype=None, tm=1024):
    """Prepare (transpose/cast) the params once and return a jitted apply(x).

    w1, w2: [H, H] in PyTorch's [out_features, in_features] layout; b1, b2: [H].
    compute_dtype: MXU operand dtype for x and the weights.  bf16 is the
        recommended setting on v5e/v6e/v7x (f32 accumulation; bias add + ReLU
        stay f32).  Defaults to the weight dtype.
    out_dtype: HBM writeback dtype (defaults to x.dtype); pass bf16 to halve
        writeback bandwidth when the consumer accepts it.
    """
    cdt = jnp.dtype(compute_dtype) if compute_dtype is not None else jnp.dtype(w1.dtype)
    w1_t = jnp.asarray(w1).T.astype(cdt)
    w2_t = jnp.asarray(w2).T.astype(cdt)
    b1_r = jnp.asarray(b1).reshape(1, -1).astype(jnp.float32)
    b2_r = jnp.asarray(b2).reshape(1, -1).astype(jnp.float32)

    @jax.jit
    def apply(x):
        return ffn_pallas(x, w1_t, b1_r, w2_t, b2_r, tm=tm, out_dtype=out_dtype)

    return apply


def ffn_reference(x, w1, b1, w2, b2):
    h = jnp.maximum(x @ w1.T + b1, 0.0)
    return h @ w2.T + b2


def ffn_reference_bf16(x, w1, b1, w2, b2):
    f = lambda a: a.astype(jnp.bfloat16).astype(jnp.float32)
    h = jnp.maximum(f(x) @ f(w1).T + b1, 0.0)
    return f(h) @ f(w2).T + b2


if __name__ == "__main__":
    H = 128  # state_size (feature dim; lane-aligned)

    key = jax.random.PRNGKey(0)
    kx, kw1, kb1, kw2, kb2, kx2, kx3 = jax.random.split(key, 7)

    # Deterministic parameter init (uniform like PyTorch's default Linear init).
    bound = 1.0 / (H ** 0.5)
    w1 = jax.random.uniform(kw1, (H, H), minval=-bound, maxval=bound, dtype=jnp.float32)
    b1 = jax.random.uniform(kb1, (H,), minval=-bound, maxval=bound, dtype=jnp.float32)
    w2 = jax.random.uniform(kw2, (H, H), minval=-bound, maxval=bound, dtype=jnp.float32)
    b2 = jax.random.uniform(kb2, (H,), minval=-bound, maxval=bound, dtype=jnp.float32)

    ffn_f32 = make_ffn(w1, b1, w2, b2)                                 # f32 everywhere
    ffn_bf16 = make_ffn(w1, b1, w2, b2, compute_dtype=jnp.bfloat16)    # bf16 operands, f32 acc

    # --- case 1: tiny module-consistent shape (batch=2, seq=8), 1-step grid --
    x_small = jax.random.normal(kx, (2, 8, H), dtype=jnp.float32)
    out = jax.block_until_ready(ffn_f32(x_small))
    ref = ffn_reference(x_small, w1, b1, w2, b2)
    assert out.shape == x_small.shape
    assert jnp.allclose(out, ref, atol=1e-4, rtol=1e-4), "f32 small mismatch"

    # --- case 2: M=400 -> split into 2 row tiles (both v7x TCs get work) -----
    x_big = jax.random.normal(kx2, (4, 100, H), dtype=jnp.float32)
    out = jax.block_until_ready(ffn_f32(x_big))
    ref = ffn_reference(x_big, w1, b1, w2, b2)
    assert out.shape == x_big.shape
    assert jnp.allclose(out, ref, atol=1e-4, rtol=1e-4), "f32 multi-tile mismatch"

    # --- case 3: ragged last tile (M=210, tm_eff=112 -> boundary masking) ----
    x_ragged = jax.random.normal(kx3, (3, 70, H), dtype=jnp.float32)
    out = jax.block_until_ready(ffn_f32(x_ragged))
    ref = ffn_reference(x_ragged, w1, b1, w2, b2)
    assert out.shape == x_ragged.shape
    assert jnp.allclose(out, ref, atol=1e-4, rtol=1e-4), "f32 ragged-tile mismatch"

    # --- case 4: bf16 operands / f32 accumulation (recommended on v5e/v6e/v7x)
    out_bf16 = jax.block_until_ready(ffn_bf16(x_big))
    ref_bf16 = ffn_reference_bf16(x_big, w1, b1, w2, b2)
    assert out_bf16.shape == x_big.shape
    assert jnp.allclose(out_bf16, ref_bf16, atol=1e-2, rtol=1e-2), "bf16 mismatch"

    print("KERNEL_OK")
</pallas_src>

<mosaic_0001>
module attributes {stable_mosaic.version = 11 : i64} {
  func.func @ffn_kernel(%arg0: i32, %arg1: memref<16x128xf32, #tpu.memory_space<vmem>>, %arg2: memref<128x128xf32, #tpu.memory_space<vmem>>, %arg3: memref<1x128xf32, #tpu.memory_space<vmem>>, %arg4: memref<128x128xf32, #tpu.memory_space<vmem>>, %arg5: memref<1x128xf32, #tpu.memory_space<vmem>>, %arg6: memref<16x128xf32, #tpu.memory_space<vmem>>) attributes {dimension_semantics = [#tpu.dimension_semantics<parallel>], iteration_bounds = array<i64: 1>, scalar_prefetch = 0 : i64, scratch_operands = 0 : i64, tpu.core_type = #tpu.core_type<tc>, window_params = [{transform_indices = @transform_0, window_bounds = array<i64: 16, 128>}, {pipeline_mode = #tpu.pipeline_mode<synchronous>, transform_indices = @transform_1, window_bounds = array<i64: 128, 128>}, {pipeline_mode = #tpu.pipeline_mode<synchronous>, transform_indices = @transform_2, window_bounds = array<i64: 1, 128>}, {pipeline_mode = #tpu.pipeline_mode<synchronous>, transform_indices = @transform_3, window_bounds = array<i64: 128, 128>}, {pipeline_mode = #tpu.pipeline_mode<synchronous>, transform_indices = @transform_4, window_bounds = array<i64: 1, 128>}, {transform_indices = @transform_5, window_bounds = array<i64: 16, 128>}]} {
    %c0 = arith.constant 0 : index
    %c0_0 = arith.constant 0 : index
    %0 = vector.load %arg1[%c0, %c0_0] : memref<16x128xf32, #tpu.memory_space<vmem>>, vector<16x128xf32>
    %c0_1 = arith.constant 0 : index
    %c0_2 = arith.constant 0 : index
    %1 = vector.load %arg2[%c0_1, %c0_2] : memref<128x128xf32, #tpu.memory_space<vmem>>, vector<128x128xf32>
    %cst = arith.constant dense<0.000000e+00> : vector<16x128xf32>
    %2 = tpu.matmul %0, %1, %cst {dimension_numbers = #tpu.dot_dimension_numbers<[1], [0], [0], [1], [0, 0, 1, 1], [], []>} : vector<16x128xf32>, vector<128x128xf32>, vector<16x128xf32> -> vector<16x128xf32>
    %c0_3 = arith.constant 0 : index
    %c0_4 = arith.constant 0 : index
    %3 = vector.load %arg3[%c0_3, %c0_4] : memref<1x128xf32, #tpu.memory_space<vmem>>, vector<1x128xf32>
    %4 = vector.broadcast %3 : vector<1x128xf32> to vector<16x128xf32>
    %5 = arith.addf %2, %4 : vector<16x128xf32>
    %cst_5 = arith.constant 0.000000e+00 : f32
    %6 = vector.broadcast %cst_5 : f32 to vector<16x128xf32>
    %7 = arith.maximumf %5, %6 : vector<16x128xf32>
    %c0_6 = arith.constant 0 : index
    %c0_7 = arith.constant 0 : index
    %8 = vector.load %arg4[%c0_6, %c0_7] : memref<128x128xf32, #tpu.memory_space<vmem>>, vector<128x128xf32>
    %cst_8 = arith.constant dense<0.000000e+00> : vector<16x128xf32>
    %9 = tpu.matmul %7, %8, %cst_8 {dimension_numbers = #tpu.dot_dimension_numbers<[1], [0], [0], [1], [0, 0, 1, 1], [], []>} : vector<16x128xf32>, vector<128x128xf32>, vector<16x128xf32> -> vector<16x128xf32>
    %c0_9 = arith.constant 0 : index
    %c0_10 = arith.constant 0 : index
    %10 = vector.load %arg5[%c0_9, %c0_10] : memref<1x128xf32, #tpu.memory_space<vmem>>, vector<1x128xf32>
    %11 = vector.broadcast %10 : vector<1x128xf32> to vector<16x128xf32>
    %12 = arith.addf %9, %11 : vector<16x128xf32>
    %c0_11 = arith.constant 0 : index
    %c0_12 = arith.constant 0 : index
    %13 = vector.load %arg6[%c0_11, %c0_12] : memref<16x128xf32, #tpu.memory_space<vmem>>, vector<16x128xf32>
    tpu.vector_store %arg6[%c0_11, %c0_12], %12 {strides = array<i32>} : memref<16x128xf32, #tpu.memory_space<vmem>>, vector<16x128xf32>,
    return
  }
  func.func @transform_0(%arg0: i32) -> (i32, i32) {
    %c0_i32 = arith.constant 0 : i32
    %c0_i32_0 = arith.constant 0 : i32
    return %arg0, %c0_i32 : i32, i32
  }
  func.func @transform_1(%arg0: i32) -> (i32, i32) {
    %c0_i32 = arith.constant 0 : i32
    %c0_i32_0 = arith.constant 0 : i32
    %c0_i32_1 = arith.constant 0 : i32
    return %c0_i32, %c0_i32_0 : i32, i32
  }
  func.func @transform_2(%arg0: i32) -> (i32, i32) {
    %c0_i32 = arith.constant 0 : i32
    %c0_i32_0 = arith.constant 0 : i32
    %c0_i32_1 = arith.constant 0 : i32
    return %c0_i32, %c0_i32_0 : i32, i32
  }
  func.func @transform_3(%arg0: i32) -> (i32, i32) {
    %c0_i32 = arith.constant 0 : i32
    %c0_i32_0 = arith.constant 0 : i32
    %c0_i32_1 = arith.constant 0 : i32
    return %c0_i32, %c0_i32_0 : i32, i32
  }
  func.func @transform_4(%arg0: i32) -> (i32, i32) {
    %c0_i32 = arith.constant 0 : i32
    %c0_i32_0 = arith.constant 0 : i32
    %c0_i32_1 = arith.constant 0 : i32
    return %c0_i32, %c0_i32_0 : i32, i32
  }
  func.func @transform_5(%arg0: i32) -> (i32, i32) {
    %c0_i32 = arith.constant 0 : i32
    %c0_i32_0 = arith.constant 0 : i32
    return %arg0, %c0_i32 : i32, i32
  }
}

</mosaic_0001>

<llo_original>
// kernel: apply.1
$region0: #{apply.1}
  #allocation0 [shape = 'u32[]', space=smem, size = 0x4, offset = 0x4, fixed_abs, tag = 'smem constant byte address 0x4 - core index']
  #allocation1 [shape = 'u32[144,128]{1,0:T(1,128)}', space=vmem, size = 0x12000, scoped, tag = 'internal scratch']
  %s0 = inlined_call_operand.hbm [shape: f32[16,128], index: 0, kind: input, shape index: {}]
  %s1 = inlined_call_operand.hbm [shape: f32[128,128], index: 1, kind: input, shape index: {}]
  %s2 = inlined_call_operand.vmem [shape: f32[1,128], index: 2, kind: input, shape index: {}]
  %s3 = inlined_call_operand.hbm [shape: f32[128,128], index: 3, kind: input, shape index: {}]
  %s4 = inlined_call_operand.vmem [shape: f32[1,128], index: 4, kind: input, shape index: {}]
  %s5 = inlined_call_operand.hbm [shape: f32[16,128], index: 5, kind: output, shape index: {}]
  %s6 = sld [smem:[#allocation0]]
  $region42: #{apply.1} parent=0
    _
  %s8 = ssub.s32 1, %s6
  %s9 = scalar_select 0, %s8, %s6
  $region1: #{apply.1} parent=0
    #allocation2 [shape = 'u8[8192]{0}', space=vmem, size = 0x2000, scoped, tag = 'input window, operand 0, single buffered']
    #allocation3 [shape = 's32[1]{0}', space=sflag, size = 0x4, scoped, tag = 'scoped memory for apply.1']
    #allocation4 [shape = 's32[1]{0}', space=sflag, size = 0x4, scoped, tag = 'scoped memory for apply.1']
    #allocation5 [shape = 'u8[65536]{0}', space=vmem, size = 0x10000, scoped, tag = 'input window, operand 1, single buffered']
    #allocation6 [shape = 's32[1]{0}', space=sflag, size = 0x4, scoped, tag = 'scoped memory for apply.1']
    #allocation7 [shape = 'u8[65536]{0}', space=vmem, size = 0x10000, scoped, tag = 'input window, operand 3, single buffered']
    #allocation8 [shape = 'u8[8192]{0}', space=vmem, size = 0x2000, scoped, tag = 'output window, operand 0, single buffered']
    %10 = vsyncpa [#allocation3], 0
    %11 = vsyncpa [#allocation6], 0
    %12 = vsyncpa [#allocation4], 0
    // Predicated region
    $region2: #{apply.1} parent=1 // pred_check
      _
    $region3: #{apply.1} parent=1 // pred_check_branch
      %14 = sbr.rel (0) target = $region5
    $region4: #{apply.1} parent=1 // pred_region
      %s16 = ssub.s32 256, 256
      %17 = vsyncadd [#allocation3], %s16
      %s18 = sshll.u32 [#allocation2], 4
      %s19 = int_to_ptr.vmem [resolvable:$true] %s18
      %24 = dma.hbm_to_vmem [thread:$0]  %s0, 256, %s19, [#allocation3], 128, 128, 8
    $region5: #{apply.1} parent=1 // pred_fallthru
      _
    // Predicated region
    $region6: #{apply.1} parent=1 // pred_check
      _
    $region7: #{apply.1} parent=1 // pred_check_branch
      %26 = sbr.rel (0) target = $region9
    $region8: #{apply.1} parent=1 // pred_region
      %s28 = ssub.s32 2048, 2048
      %29 = vsyncadd [#allocation6], %s28
      %s30 = sshll.u32 [#allocation5], 4
      %s31 = int_to_ptr.vmem [resolvable:$true] %s30
      %36 = dma.hbm_to_vmem [thread:$0]  %s1, 2048, %s31, [#allocation6], 128, 128, 8
    $region9: #{apply.1} parent=1 // pred_fallthru
      _
    // Predicated region
    $region10: #{apply.1} parent=1 // pred_check
      _
    $region11: #{apply.1} parent=1 // pred_check_branch
      %38 = sbr.rel (0) target = $region13
    $region12: #{apply.1} parent=1 // pred_region
      _
    $region13: #{apply.1} parent=1 // pred_fallthru
      _
    // Predicated region
    $region14: #{apply.1} parent=1 // pred_check
      _
    $region15: #{apply.1} parent=1 // pred_check_branch
      %40 = sbr.rel (0) target = $region17
    $region16: #{apply.1} parent=1 // pred_region
      %s42 = ssub.s32 2048, 2048
      %43 = vsyncadd [#allocation6], %s42
      %s44 = sshll.u32 [#allocation7], 4
      %s45 = int_to_ptr.vmem [resolvable:$true] %s44
      %50 = dma.hbm_to_vmem [thread:$0]  %s3, 2048, %s45, [#allocation6], 128, 128, 8
    $region17: #{apply.1} parent=1 // pred_fallthru
      _
    // Predicated region
    $region18: #{apply.1} parent=1 // pred_check
      _
    $region19: #{apply.1} parent=1 // pred_check_branch
      %52 = sbr.rel (0) target = $region21
    $region20: #{apply.1} parent=1 // pred_region
      _
    $region21: #{apply.1} parent=1 // pred_fallthru
      _
    // Predicated region
    $region22: #{apply.1} parent=1 // pred_check
      _
    $region23: #{apply.1} parent=1 // pred_check_branch
      %54 = sbr.rel (0) target = $region25
    $region24: #{apply.1} parent=1 // pred_region
      %55 = dma.done [#allocation3], 256
    $region25: #{apply.1} parent=1 // pred_fallthru
      _
    // Predicated region
    $region26: #{apply.1} parent=1 // pred_check
      _
    $region27: #{apply.1} parent=1 // pred_check_branch
      %57 = sbr.rel (0) target = $region29
    $region28: #{apply.1} parent=1 // pred_region
      %58 = dma.done [#allocation6], 2048
    $region29: #{apply.1} parent=1 // pred_fallthru
      _
    // Predicated region
    $region30: #{apply.1} parent=1 // pred_check
      _
    $region31: #{apply.1} parent=1 // pred_check_branch
      %60 = sbr.rel (0) target = $region33
    $region32: #{apply.1} parent=1 // pred_region
      %61 = dma.done [#allocation6], 2048
    $region33: #{apply.1} parent=1 // pred_fallthru
      _
    %v62 = vld [vmem:[#allocation2] sm:$0xff]
    %v63 = vld [vmem:[#allocation2 + $0x8] sm:$0xff]
    %v64 = vld [vmem:[#allocation5] sm:$0xff]
    %v65 = vld [vmem:[#allocation5 + $0x8] sm:$0xff]
    %v66 = vld [vmem:[#allocation5 + $0x10] sm:$0xff]
    %v67 = vld [vmem:[#allocation5 + $0x18] sm:$0xff]
    %v68 = vld [vmem:[#allocation5 + $0x20] sm:$0xff]
    %v69 = vld [vmem:[#allocation5 + $0x28] sm:$0xff]
    %v70 = vld [vmem:[#allocation5 + $0x30] sm:$0xff]
    %v71 = vld [vmem:[#allocation5 + $0x38] sm:$0xff]
    %v72 = vld [vmem:[#allocation5 + $0x40] sm:$0xff]
    %v73 = vld [vmem:[#allocation5 + $0x48] sm:$0xff]
    %v74 = vld [vmem:[#allocation5 + $0x50] sm:$0xff]
    %v75 = vld [vmem:[#allocation5 + $0x58] sm:$0xff]
    %v76 = vld [vmem:[#allocation5 + $0x60] sm:$0xff]
    %v77 = vld [vmem:[#allocation5 + $0x68] sm:$0xff]
    %v78 = vld [vmem:[#allocation5 + $0x70] sm:$0xff]
    %v79 = vld [vmem:[#allocation5 + $0x78] sm:$0xff]
    %v80 = vld [vmem:[%s2] sm:$0x1]
    %v82 = vlaneseq
    %v83 = vshrl.u32 %v82, 7
    %v84 = vsub.s32 0, %v83
    %v85 = vrot.slane %v80, %v84
    %87 = vmatprep.subr.mxu0 0.0
    %88 = vmatpush1.msra.mxu0 %v64
    %89 = vmatprep.subr.mxu0 0.0
    %90 = vmatpush1.msra.mxu0 %v65
    %91 = vmatprep.subr.mxu0 0.0
    %92 = vmatpush1.msra.mxu0 %v66
    %93 = vmatprep.subr.mxu0 0.0
    %94 = vmatpush1.msra.mxu0 %v67
    %95 = vmatprep.subr.mxu0 0.0
    %96 = vmatpush1.msra.mxu0 %v68
    %97 = vmatprep.subr.mxu0 0.0
    %98 = vmatpush1.msra.mxu0 %v69
    %99 = vmatprep.subr.mxu0 0.0
    %100 = vmatpush1.msra.mxu0 %v70
    %101 = vmatprep.subr.mxu0 0.0
    %102 = vmatpush1.msra.mxu0 %v71
    %103 = vmatprep.subr.mxu0 0.0
    %104 = vmatpush1.msra.mxu0 %v72
    %105 = vmatprep.subr.mxu0 0.0
    %106 = vmatpush1.msra.mxu0 %v73
    %107 = vmatprep.subr.mxu0 0.0
    %108 = vmatpush1.msra.mxu0 %v74
    %109 = vmatprep.subr.mxu0 0.0
    %110 = vmatpush1.msra.mxu0 %v75
    %111 = vmatprep.subr.mxu0 0.0
    %112 = vmatpush1.msra.mxu0 %v76
    %113 = vmatprep.subr.mxu0 0.0
    %114 = vmatpush1.msra.mxu0 %v77
    %115 = vmatprep.subr.mxu0 0.0
    %116 = vmatpush1.msra.mxu0 %v78
    %117 = vmatprep.subr.mxu0 0.0
    %118 = vmatpush1.msra.mxu0 %v79
    %119 = vmatprep.subr.mxu0 0.0
    %120 = vmatpush1.msra.mxu0 0.0
    %121 = vmatprep.subr.mxu0 0.0
    %122 = vmatpush1.msra.mxu0 0.0
    %123 = vmatprep.subr.mxu0 0.0
    %124 = vmatpush1.msra.mxu0 0.0
    %125 = vmatprep.subr.mxu0 0.0
    %126 = vmatpush1.msra.mxu0 0.0
    %127 = vmatprep.subr.mxu0 0.0
    %128 = vmatpush1.msra.mxu0 0.0
    %129 = vmatprep.subr.mxu0 0.0
    %130 = vmatpush1.msra.mxu0 0.0
    %131 = vmatprep.subr.mxu0 0.0
    %132 = vmatpush1.msra.mxu0 0.0
    %133 = vmatprep.subr.mxu0 0.0
    %134 = vmatpush1.msra.mxu0 0.0
    %135 = vmatprep.subr.mxu0 0.0
    %136 = vmatpush1.msra.mxu0 0.0
    %137 = vmatprep.subr.mxu0 0.0
    %138 = vmatpush1.msra.mxu0 0.0
    %139 = vmatprep.subr.mxu0 0.0
    %140 = vmatpush1.msra.mxu0 0.0
    %141 = vmatprep.subr.mxu0 0.0
    %142 = vmatpush1.msra.mxu0 0.0
    %143 = vmatprep.subr.mxu0 0.0
    %144 = vmatpush1.msra.mxu0 0.0
    %145 = vmatprep.subr.mxu0 0.0
    %146 = vmatpush1.msra.mxu0 0.0
    %147 = vmatprep.subr.mxu0 0.0
    %148 = vmatpush1.msra.mxu0 0.0
    %149 = vmatprep.subr.mxu0 0.0
    %150 = vmatpush1.msra.mxu0 0.0
    %151 = vmatprep.mubr.f32.mxu0 0.0
    %152 = vmatmul.mubr.f32.gmra.mrb[0].mxu0 %v62
    %v153 = vpop.f32.mrb[0].mxu0
    %v154 = vadd.f32 %v85, %v153
    %v155 = vpop.f32.mrb[0].mxu0
    %156 = vmatprep.mubr.f32.mxu0 0.0
    %157 = vmatmul.mubr.f32.gmra.mrb[0].mxu0 %v63
    %v158 = vpop.f32.mrb[0].mxu0
    %v159 = vadd.f32 %v85, %v158
    %v160 = vpop.f32.mrb[0].mxu0
    %161 = vdwg.mxu0
    %v162 = vmax.f32 %v154, 0.0
    %v163 = vmax.f32 %v159, 0.0
    %v164 = vld [vmem:[#allocation7] sm:$0xff]
    %v165 = vld [vmem:[#allocation7 + $0x8] sm:$0xff]
    %v166 = vld [vmem:[#allocation7 + $0x10] sm:$0xff]
    %v167 = vld [vmem:[#allocation7 + $0x18] sm:$0xff]
    %v168 = vld [vmem:[#allocation7 + $0x20] sm:$0xff]
    %v169 = vld [vmem:[#allocation7 + $0x28] sm:$0xff]
    %v170 = vld [vmem:[#allocation7 + $0x30] sm:$0xff]
    %v171 = vld [vmem:[#allocation7 + $0x38] sm:$0xff]
    %v172 = vld [vmem:[#allocation7 + $0x40] sm:$0xff]
    %v173 = vld [vmem:[#allocation7 + $0x48] sm:$0xff]
    %v174 = vld [vmem:[#allocation7 + $0x50] sm:$0xff]
    %v175 = vld [vmem:[#allocation7 + $0x58] sm:$0xff]
    %v176 = vld [vmem:[#allocation7 + $0x60] sm:$0xff]
    %v177 = vld [vmem:[#allocation7 + $0x68] sm:$0xff]
    %v178 = vld [vmem:[#allocation7 + $0x70] sm:$0xff]
    %v179 = vld [vmem:[#allocation7 + $0x78] sm:$0xff]
    %v180 = vld [vmem:[%s4] sm:$0x1]
    %v182 = vlaneseq
    %v183 = vshrl.u32 %v182, 7
    %v184 = vsub.s32 0, %v183
    %v185 = vrot.slane %v180, %v184
    %187 = vmatprep.subr.mxu0 0.0
    %188 = vmatpush1.msra.mxu0 %v164
    %189 = vmatprep.subr.mxu0 0.0
    %190 = vmatpush1.msra.mxu0 %v165
    %191 = vmatprep.subr.mxu0 0.0
    %192 = vmatpush1.msra.mxu0 %v166
    %193 = vmatprep.subr.mxu0 0.0
    %194 = vmatpush1.msra.mxu0 %v167
    %195 = vmatprep.subr.mxu0 0.0
    %196 = vmatpush1.msra.mxu0 %v168
    %197 = vmatprep.subr.mxu0 0.0
    %198 = vmatpush1.msra.mxu0 %v169
    %199 = vmatprep.subr.mxu0 0.0
    %200 = vmatpush1.msra.mxu0 %v170
    %201 = vmatprep.subr.mxu0 0.0
    %202 = vmatpush1.msra.mxu0 %v171
    %203 = vmatprep.subr.mxu0 0.0
    %204 = vmatpush1.msra.mxu0 %v172
    %205 = vmatprep.subr.mxu0 0.0
    %206 = vmatpush1.msra.mxu0 %v173
    %207 = vmatprep.subr.mxu0 0.0
    %208 = vmatpush1.msra.mxu0 %v174
    %209 = vmatprep.subr.mxu0 0.0
    %210 = vmatpush1.msra.mxu0 %v175
    %211 = vmatprep.subr.mxu0 0.0
    %212 = vmatpush1.msra.mxu0 %v176
    %213 = vmatprep.subr.mxu0 0.0
    %214 = vmatpush1.msra.mxu0 %v177
    %215 = vmatprep.subr.mxu0 0.0
    %216 = vmatpush1.msra.mxu0 %v178
    %217 = vmatprep.subr.mxu0 0.0
    %218 = vmatpush1.msra.mxu0 %v179
    %219 = vmatprep.subr.mxu0 0.0
    %220 = vmatpush1.msra.mxu0 0.0
    %221 = vmatprep.subr.mxu0 0.0
    %222 = vmatpush1.msra.mxu0 0.0
    %223 = vmatprep.subr.mxu0 0.0
    %224 = vmatpush1.msra.mxu0 0.0
    %225 = vmatprep.subr.mxu0 0.0
    %226 = vmatpush1.msra.mxu0 0.0
    %227 = vmatprep.subr.mxu0 0.0
    %228 = vmatpush1.msra.mxu0 0.0
    %229 = vmatprep.subr.mxu0 0.0
    %230 = vmatpush1.msra.mxu0 0.0
    %231 = vmatprep.subr.mxu0 0.0
    %232 = vmatpush1.msra.mxu0 0.0
    %233 = vmatprep.subr.mxu0 0.0
    %234 = vmatpush1.msra.mxu0 0.0
    %235 = vmatprep.subr.mxu0 0.0
    %236 = vmatpush1.msra.mxu0 0.0
    %237 = vmatprep.subr.mxu0 0.0
    %238 = vmatpush1.msra.mxu0 0.0
    %239 = vmatprep.subr.mxu0 0.0
    %240 = vmatpush1.msra.mxu0 0.0
    %241 = vmatprep.subr.mxu0 0.0
    %242 = vmatpush1.msra.mxu0 0.0
    %243 = vmatprep.subr.mxu0 0.0
    %244 = vmatpush1.msra.mxu0 0.0
    %245 = vmatprep.subr.mxu0 0.0
    %246 = vmatpush1.msra.mxu0 0.0
    %247 = vmatprep.subr.mxu0 0.0
    %248 = vmatpush1.msra.mxu0 0.0
    %249 = vmatprep.subr.mxu0 0.0
    %250 = vmatpush1.msra.mxu0 0.0
    %251 = vmatprep.mubr.f32.mxu0 0.0
    %252 = vmatmul.mubr.f32.gmra.mrb[0].mxu0 %v162
    %v253 = vpop.f32.mrb[0].mxu0
    %v254 = vadd.f32 %v185, %v253
    %v255 = vpop.f32.mrb[0].mxu0
    %256 = vmatprep.mubr.f32.mxu0 0.0
    %257 = vmatmul.mubr.f32.gmra.mrb[0].mxu0 %v163
    %v258 = vpop.f32.mrb[0].mxu0
    %v259 = vadd.f32 %v185, %v258
    %v260 = vpop.f32.mrb[0].mxu0
    %261 = vdwg.mxu0
    %262 = vst [vmem:[#allocation8] sm:$0xff] %v254
    %263 = vst [vmem:[#allocation8 + $0x8] sm:$0xff] %v259
    // Predicated region
    $region34: #{apply.1} parent=1 // pred_check
      _
    $region35: #{apply.1} parent=1 // pred_check_branch
      %265 = sbr.rel (0) target = $region37
    $region36: #{apply.1} parent=1 // pred_region
      %s267 = ssub.s32 256, 256
      %268 = vsyncadd [#allocation4], %s267
      %s269 = sshll.u32 [#allocation8], 4
      %s270 = int_to_ptr.vmem [resolvable:$true] %s269
      %275 = dma.vmem_to_hbm [thread:$0]  %s270, 256, %s5, [#allocation4], 128, 128, 8
    $region37: #{apply.1} parent=1 // pred_fallthru
      _
    // Predicated region
    $region38: #{apply.1} parent=1 // pred_check
      _
    $region39: #{apply.1} parent=1 // pred_check_branch
      %277 = sbr.rel (0) target = $region41
    $region40: #{apply.1} parent=1 // pred_region
      %278 = dma.done [#allocation4], 256
    $region41: #{apply.1} parent=1 // pred_fallthru
      _
    %279 = vsyncpa [#allocation3], 1
    %280 = vsyncpa [#allocation6], 1
    %281 = vsyncpa [#allocation4], 1

</llo_original>
